<compile_context>
chip_gen: v7x
topology: tpu7x:2x2x1
jax: 0.10.0
libtpu: 0.0.40
codegen_flags: <defaults>
</compile_context>

<pallas_src>
import functools

import numpy as np
import jax
import jax.numpy as jnp
from jax.experimental import pallas as pl
from jax.experimental.pallas import tpu as pltpu


def _round_up(x, m):
    return ((x + m - 1) // m) * m


def _tanh_bf16_ok():
    """bf16 VPU/EUP fast path exists on v6e / v7x; stay f32 elsewhere (v5e...)."""
    try:
        kind = jax.devices()[0].device_kind.lower()
    except Exception:
        return False
    return any(tag in kind for tag in ("v6", "v7", "7x"))


# ---------------------------------------------------------------------------
# Shared math, used by BOTH the Pallas kernel body and the pure-JAX reference
# so the correctness check is tight.
#   h1 = tanh(s  @ W1 + b1)      (layer 1: f32 VPU broadcast-FMA, K = 3)
#   h2 = tanh(h1 @ W2 + b2)      (bf16 MXU, f32 accumulation)
#   h3 = tanh(h2 @ W3 + b3)
#   out = h3 * gain + off
# ---------------------------------------------------------------------------
def _mlp_math(s, w1, b1, w2, b2, w3, b3, gain, off, act_dtype):
    f32, bf16 = jnp.float32, jnp.bfloat16
    # Layer 1: contraction dim is tiny (state_dim), so use broadcast
    # multiply-adds on the VPU in exact f32 instead of pushing the MXU.
    z1 = b1.astype(f32)
    for k in range(s.shape[1]):
        z1 = z1 + s[:, k:k + 1].astype(f32) * w1[k:k + 1, :].astype(f32)
    h1 = jnp.tanh(z1.astype(act_dtype)).astype(bf16)
    z2 = jnp.dot(h1, w2, preferred_element_type=f32) + b2
    h2 = jnp.tanh(z2.astype(act_dtype)).astype(bf16)
    z3 = jnp.dot(h2, w3, preferred_element_type=f32) + b3
    h3 = jnp.tanh(z3)                           # final tanh kept in f32
    return h3 * gain + off


def actor_fwd_kernel(s_ref, w1_ref, b1_ref, w2_ref, b2_ref, w3_ref, b3_ref,
                     gain_ref, off_ref, o_ref, *, act_dtype):
    o_ref[...] = _mlp_math(
        s_ref[...], w1_ref[...], b1_ref[...], w2_ref[...], b2_ref[...],
        w3_ref[...], b3_ref[...], gain_ref[...], off_ref[...], act_dtype)


# ---------------------------------------------------------------------------
# One-time parameter preparation (hoisted out of the per-call path).
# ---------------------------------------------------------------------------
def prepare_params(params):
    w1, b1, w2, b2, w3, b3, gain, off = params
    action_dim = w3.shape[1]
    A_pad = _round_up(max(action_dim, 1), 8)        # small padded output width
    f32, bf16 = jnp.float32, jnp.bfloat16

    w1p = jnp.asarray(w1, f32)                                   # [state_dim, 256]
    w2p = jnp.asarray(w2, f32).astype(bf16)                      # [256, 256]
    w3p = jnp.zeros((w3.shape[0], A_pad), bf16).at[:, :action_dim].set(
        jnp.asarray(w3, f32).astype(bf16))                       # [256, A_pad]
    b1p = jnp.asarray(b1, f32).reshape(1, -1)
    b2p = jnp.asarray(b2, f32).reshape(1, -1)
    b3p = jnp.zeros((1, A_pad), f32).at[:, :action_dim].set(
        jnp.asarray(b3, f32).reshape(1, -1))
    gainp = jnp.zeros((1, A_pad), f32).at[:, :action_dim].set(
        jnp.asarray(gain, f32).reshape(1, -1))
    offp = jnp.zeros((1, A_pad), f32).at[:, :action_dim].set(
        jnp.asarray(off, f32).reshape(1, -1))
    return (w1p, b1p, w2p, b2p, w3p, b3p, gainp, offp), action_dim


# ---------------------------------------------------------------------------
# Forward wrapper around pallas_call.
# ---------------------------------------------------------------------------
def ppo_actor_forward(s, prepared, action_dim, *, tb=1024,
                      act_dtype=jnp.float32):
    """s: [B, state_dim] f32 -> [B, action_dim] f32."""
    w1p, b1p, w2p, b2p, w3p, b3p, gainp, offp = prepared
    B, state_dim = s.shape
    A_pad = w3p.shape[1]

    # Batch tile: multiple of 8, capped at `tb` (VMEM stays << v5e's 16 MiB
    # scoped default at tb=1024), and small enough that the grid has >= 2
    # steps whenever B allows it so v7x megacore can split the batch axis.
    B8 = _round_up(max(B, 1), 8)
    half = _round_up(pl.cdiv(B8, 2), 8)
    TB = max(8, min(tb, half))
    B_pad = _round_up(B8, TB)

    s32 = s.astype(jnp.float32)
    s_in = s32 if B_pad == B else jnp.pad(s32, ((0, B_pad - B), (0, 0)))

    grid = (B_pad // TB,)

    def resident(arr):   # constant index_map -> block stays VMEM-resident
        return pl.BlockSpec(arr.shape, lambda i: (0, 0))

    kernel = functools.partial(actor_fwd_kernel, act_dtype=act_dtype)

    out = pl.pallas_call(
        kernel,
        out_shape=jax.ShapeDtypeStruct((B_pad, A_pad), jnp.float32),
        grid=grid,
        in_specs=[
            pl.BlockSpec((TB, state_dim), lambda i: (i, 0)),   # states, batch-tiled
            resident(w1p), resident(b1p),
            resident(w2p), resident(b2p),
            resident(w3p), resident(b3p),
            resident(gainp), resident(offp),
        ],
        out_specs=pl.BlockSpec((TB, A_pad), lambda i: (i, 0)),
        compiler_params=pltpu.CompilerParams(
            dimension_semantics=("parallel",)),
    )(s_in, w1p, b1p, w2p, b2p, w3p, b3p, gainp, offp)

    return out[:B, :action_dim]


def make_forward(prepared, action_dim, *, tb=1024, act_dtype=None):
    if act_dtype is None:
        act_dtype = jnp.bfloat16 if _tanh_bf16_ok() else jnp.float32
    fwd = jax.jit(functools.partial(
        ppo_actor_forward, prepared=prepared, action_dim=action_dim,
        tb=tb, act_dtype=act_dtype))
    return fwd, act_dtype


# ---------------------------------------------------------------------------
# References.
# ---------------------------------------------------------------------------
def reference_forward_prepared(s, prepared, action_dim, act_dtype):
    """Exact same dtype policy as the kernel (tight check)."""
    return _mlp_math(s, *prepared, act_dtype)[:, :action_dim]


def reference_forward_f32(s, params):
    """Pure f32 reference mirroring the PyTorch module semantics."""
    w1, b1, w2, b2, w3, b3, gain, off = params
    h = jnp.tanh(s @ w1 + b1)
    h = jnp.tanh(h @ w2 + b2)
    h = jnp.tanh(h @ w3 + b3)
    return h * gain + off


# ---------------------------------------------------------------------------
# Deterministic parameter init (mirrors nn.init.orthogonal_ + zero bias),
# done host-side in numpy.  Weights built in PyTorch's [out, in] convention
# then transposed to [in, out].
# ---------------------------------------------------------------------------
def orthogonal_np(rng, out_dim, in_dim, gain=1.0):
    a = rng.standard_normal((out_dim, in_dim)).astype(np.float32)
    transposed = out_dim < in_dim
    if transposed:
        a = a.T
    q, r = np.linalg.qr(a)
    d = np.sign(np.diag(r))
    d = np.where(d == 0, 1.0, d)
    q = q * d[None, :]
    if transposed:
        q = q.T
    return (gain * q).astype(np.float32)          # [out, in]


def make_params(state_dim=3, action_dim=3, a_min=None, a_max=None):
    if a_min is None:
        a_min = np.zeros(action_dim, dtype=np.float32)
    if a_max is None:
        a_max = np.ones(action_dim, dtype=np.float32)
    rng = np.random.default_rng(0)
    w1 = jnp.asarray(orthogonal_np(rng, 256, state_dim, 1.0).T)     # [state_dim, 256]
    w2 = jnp.asarray(orthogonal_np(rng, 256, 256, 1.0).T)           # [256, 256]
    w3 = jnp.asarray(orthogonal_np(rng, action_dim, 256, 0.01).T)   # [256, action_dim]
    b1 = jnp.zeros((1, 256), jnp.float32)
    b2 = jnp.zeros((1, 256), jnp.float32)
    b3 = jnp.zeros((1, action_dim), jnp.float32)
    a_min = jnp.asarray(a_min, jnp.float32)
    a_max = jnp.asarray(a_max, jnp.float32)
    off = ((a_min + a_max) / 2.0).reshape(1, action_dim)
    gain = a_max.reshape(1, action_dim) - off
    return (w1, b1, w2, b2, w3, b3, gain, off)


# TODO(synk): get_dist/evaluate (torch.distributions.Normal with constant std)
# are sampling-side utilities; only the deterministic forward mean is kernelized.

if __name__ == "__main__":
    state_dim, action_dim = 3, 3

    params = make_params(state_dim, action_dim,
                         a_min=np.zeros(action_dim, np.float32),
                         a_max=np.ones(action_dim, np.float32))
    prepared, adim = prepare_params(params)
    fwd, act_dtype = make_forward(prepared, adim, tb=1024)

    key = jax.random.PRNGKey(0)
    for batch in (8, 300):      # single grid step, and a multi-step (padded) grid
        key, sub = jax.random.split(key)
        s = jax.random.normal(sub, (batch, state_dim), dtype=jnp.float32)

        out = jax.block_until_ready(fwd(s))
        assert out.shape == (batch, action_dim)

        # Tight check against a reference with the identical dtype policy.
        ref = reference_forward_prepared(s, prepared, adim, act_dtype)
        np.testing.assert_allclose(np.asarray(out), np.asarray(ref),
                                   rtol=1e-3, atol=1e-3)

        # Looser check against the pure-f32 (PyTorch-equivalent) semantics.
        ref32 = reference_forward_f32(s, params)
        np.testing.assert_allclose(np.asarray(out), np.asarray(ref32),
                                   rtol=5e-2, atol=5e-3)

    print("KERNEL_OK")
</pallas_src>

<mosaic_0001>
module attributes {stable_mosaic.version = 11 : i64} {
  func.func @actor_fwd_kernel(%arg0: i32, %arg1: memref<8x3xf32, #tpu.memory_space<vmem>>, %arg2: memref<3x256xf32, #tpu.memory_space<vmem>>, %arg3: memref<1x256xf32, #tpu.memory_space<vmem>>, %arg4: memref<256x256xbf16, #tpu.memory_space<vmem>>, %arg5: memref<1x256xf32, #tpu.memory_space<vmem>>, %arg6: memref<256x8xbf16, #tpu.memory_space<vmem>>, %arg7: memref<1x8xf32, #tpu.memory_space<vmem>>, %arg8: memref<1x8xf32, #tpu.memory_space<vmem>>, %arg9: memref<1x8xf32, #tpu.memory_space<vmem>>, %arg10: memref<8x8xf32, #tpu.memory_space<vmem>>) attributes {dimension_semantics = [#tpu.dimension_semantics<parallel>], iteration_bounds = array<i64: 1>, scalar_prefetch = 0 : i64, scratch_operands = 0 : i64, tpu.core_type = #tpu.core_type<tc>, window_params = [{transform_indices = @transform_0, window_bounds = array<i64: 8, 3>}, {pipeline_mode = #tpu.pipeline_mode<synchronous>, transform_indices = @transform_1, window_bounds = array<i64: 3, 256>}, {pipeline_mode = #tpu.pipeline_mode<synchronous>, transform_indices = @transform_2, window_bounds = array<i64: 1, 256>}, {pipeline_mode = #tpu.pipeline_mode<synchronous>, transform_indices = @transform_3, window_bounds = array<i64: 256, 256>}, {pipeline_mode = #tpu.pipeline_mode<synchronous>, transform_indices = @transform_4, window_bounds = array<i64: 1, 256>}, {pipeline_mode = #tpu.pipeline_mode<synchronous>, transform_indices = @transform_5, window_bounds = array<i64: 256, 8>}, {pipeline_mode = #tpu.pipeline_mode<synchronous>, transform_indices = @transform_6, window_bounds = array<i64: 1, 8>}, {pipeline_mode = #tpu.pipeline_mode<synchronous>, transform_indices = @transform_7, window_bounds = array<i64: 1, 8>}, {pipeline_mode = #tpu.pipeline_mode<synchronous>, transform_indices = @transform_8, window_bounds = array<i64: 1, 8>}, {transform_indices = @transform_9, window_bounds = array<i64: 8, 8>}]} {
    %c0 = arith.constant 0 : index
    %c0_0 = arith.constant 0 : index
    %0 = vector.load %arg1[%c0, %c0_0] : memref<8x3xf32, #tpu.memory_space<vmem>>, vector<8x3xf32>
    %c0_1 = arith.constant 0 : index
    %c0_2 = arith.constant 0 : index
    %1 = vector.load %arg2[%c0_1, %c0_2] : memref<3x256xf32, #tpu.memory_space<vmem>>, vector<3x256xf32>
    %c0_3 = arith.constant 0 : index
    %c0_4 = arith.constant 0 : index
    %2 = vector.load %arg3[%c0_3, %c0_4] : memref<1x256xf32, #tpu.memory_space<vmem>>, vector<1x256xf32>
    %c0_5 = arith.constant 0 : index
    %c0_6 = arith.constant 0 : index
    %3 = vector.load %arg4[%c0_5, %c0_6] : memref<256x256xbf16, #tpu.memory_space<vmem>>, vector<256x256xbf16>
    %c0_7 = arith.constant 0 : index
    %c0_8 = arith.constant 0 : index
    %4 = vector.load %arg5[%c0_7, %c0_8] : memref<1x256xf32, #tpu.memory_space<vmem>>, vector<1x256xf32>
    %c0_9 = arith.constant 0 : index
    %c0_10 = arith.constant 0 : index
    %5 = vector.load %arg6[%c0_9, %c0_10] : memref<256x8xbf16, #tpu.memory_space<vmem>>, vector<256x8xbf16>
    %c0_11 = arith.constant 0 : index
    %c0_12 = arith.constant 0 : index
    %6 = vector.load %arg7[%c0_11, %c0_12] : memref<1x8xf32, #tpu.memory_space<vmem>>, vector<1x8xf32>
    %c0_13 = arith.constant 0 : index
    %c0_14 = arith.constant 0 : index
    %7 = vector.load %arg8[%c0_13, %c0_14] : memref<1x8xf32, #tpu.memory_space<vmem>>, vector<1x8xf32>
    %c0_15 = arith.constant 0 : index
    %c0_16 = arith.constant 0 : index
    %8 = vector.load %arg9[%c0_15, %c0_16] : memref<1x8xf32, #tpu.memory_space<vmem>>, vector<1x8xf32>
    %9 = vector.extract_strided_slice %0 {offsets = [0, 0], sizes = [8, 1], strides = [1, 1]} : vector<8x3xf32> to vector<8x1xf32>
    %10 = vector.extract_strided_slice %1 {offsets = [0, 0], sizes = [1, 256], strides = [1, 1]} : vector<3x256xf32> to vector<1x256xf32>
    %11 = vector.broadcast %9 : vector<8x1xf32> to vector<8x256xf32>
    %12 = vector.broadcast %10 : vector<1x256xf32> to vector<8x256xf32>
    %13 = arith.mulf %11, %12 : vector<8x256xf32>
    %14 = vector.broadcast %2 : vector<1x256xf32> to vector<8x256xf32>
    %15 = arith.addf %14, %13 : vector<8x256xf32>
    %16 = vector.extract_strided_slice %0 {offsets = [0, 1], sizes = [8, 1], strides = [1, 1]} : vector<8x3xf32> to vector<8x1xf32>
    %17 = vector.extract_strided_slice %1 {offsets = [1, 0], sizes = [1, 256], strides = [1, 1]} : vector<3x256xf32> to vector<1x256xf32>
    %18 = vector.broadcast %16 : vector<8x1xf32> to vector<8x256xf32>
    %19 = vector.broadcast %17 : vector<1x256xf32> to vector<8x256xf32>
    %20 = arith.mulf %18, %19 : vector<8x256xf32>
    %21 = arith.addf %15, %20 : vector<8x256xf32>
    %22 = vector.extract_strided_slice %0 {offsets = [0, 2], sizes = [8, 1], strides = [1, 1]} : vector<8x3xf32> to vector<8x1xf32>
    %23 = vector.extract_strided_slice %1 {offsets = [2, 0], sizes = [1, 256], strides = [1, 1]} : vector<3x256xf32> to vector<1x256xf32>
    %24 = vector.broadcast %22 : vector<8x1xf32> to vector<8x256xf32>
    %25 = vector.broadcast %23 : vector<1x256xf32> to vector<8x256xf32>
    %26 = arith.mulf %24, %25 : vector<8x256xf32>
    %27 = arith.addf %21, %26 : vector<8x256xf32>
    %28 = math.tanh %27 : vector<8x256xf32>
    %29 = arith.truncf %28 : vector<8x256xf32> to vector<8x256xbf16>
    %cst = arith.constant dense<0.000000e+00> : vector<8x256xf32>
    %30 = tpu.matmul %29, %3, %cst {dimension_numbers = #tpu.dot_dimension_numbers<[1], [0], [0], [1], [0, 0, 1, 1], [], []>} : vector<8x256xbf16>, vector<256x256xbf16>, vector<8x256xf32> -> vector<8x256xf32>
    %31 = vector.broadcast %4 : vector<1x256xf32> to vector<8x256xf32>
    %32 = arith.addf %30, %31 : vector<8x256xf32>
    %33 = math.tanh %32 : vector<8x256xf32>
    %34 = arith.truncf %33 : vector<8x256xf32> to vector<8x256xbf16>
    %cst_17 = arith.constant dense<0.000000e+00> : vector<8x8xf32>
    %35 = tpu.matmul %34, %5, %cst_17 {dimension_numbers = #tpu.dot_dimension_numbers<[1], [0], [0], [1], [0, 0, 1, 1], [], []>} : vector<8x256xbf16>, vector<256x8xbf16>, vector<8x8xf32> -> vector<8x8xf32>
    %36 = vector.broadcast %6 : vector<1x8xf32> to vector<8x8xf32>
    %37 = arith.addf %35, %36 : vector<8x8xf32>
    %38 = math.tanh %37 : vector<8x8xf32>
    %39 = vector.broadcast %7 : vector<1x8xf32> to vector<8x8xf32>
    %40 = arith.mulf %38, %39 : vector<8x8xf32>
    %41 = vector.broadcast %8 : vector<1x8xf32> to vector<8x8xf32>
    %42 = arith.addf %40, %41 : vector<8x8xf32>
    %c0_18 = arith.constant 0 : index
    %c0_19 = arith.constant 0 : index
    %43 = vector.load %arg10[%c0_18, %c0_19] : memref<8x8xf32, #tpu.memory_space<vmem>>, vector<8x8xf32>
    tpu.vector_store %arg10[%c0_18, %c0_19], %42 {strides = array<i32>} : memref<8x8xf32, #tpu.memory_space<vmem>>, vector<8x8xf32>,
    return
  }
  func.func @transform_0(%arg0: i32) -> (i32, i32) {
    %c0_i32 = arith.constant 0 : i32
    %c0_i32_0 = arith.constant 0 : i32
    return %arg0, %c0_i32 : i32, i32
  }
  func.func @transform_1(%arg0: i32) -> (i32, i32) {
    %c0_i32 = arith.constant 0 : i32
    %c0_i32_0 = arith.constant 0 : i32
    %c0_i32_1 = arith.constant 0 : i32
    return %c0_i32, %c0_i32_0 : i32, i32
  }
  func.func @transform_2(%arg0: i32) -> (i32, i32) {
    %c0_i32 = arith.constant 0 : i32
    %c0_i32_0 = arith.constant 0 : i32
    %c0_i32_1 = arith.constant 0 : i32
    return %c0_i32, %c0_i32_0 : i32, i32
  }
  func.func @transform_3(%arg0: i32) -> (i32, i32) {
    %c0_i32 = arith.constant 0 : i32
    %c0_i32_0 = arith.constant 0 : i32
    %c0_i32_1 = arith.constant 0 : i32
    return %c0_i32, %c0_i32_0 : i32, i32
  }
  func.func @transform_4(%arg0: i32) -> (i32, i32) {
    %c0_i32 = arith.constant 0 : i32
    %c0_i32_0 = arith.constant 0 : i32
    %c0_i32_1 = arith.constant 0 : i32
    return %c0_i32, %c0_i32_0 : i32, i32
  }
  func.func @transform_5(%arg0: i32) -> (i32, i32) {
    %c0_i32 = arith.constant 0 : i32
    %c0_i32_0 = arith.constant 0 : i32
    %c0_i32_1 = arith.constant 0 : i32
    return %c0_i32, %c0_i32_0 : i32, i32
  }
  func.func @transform_6(%arg0: i32) -> (i32, i32) {
    %c0_i32 = arith.constant 0 : i32
    %c0_i32_0 = arith.constant 0 : i32
    %c0_i32_1 = arith.constant 0 : i32
    return %c0_i32, %c0_i32_0 : i32, i32
  }
  func.func @transform_7(%arg0: i32) -> (i32, i32) {
    %c0_i32 = arith.constant 0 : i32
    %c0_i32_0 = arith.constant 0 : i32
    %c0_i32_1 = arith.constant 0 : i32
    return %c0_i32, %c0_i32_0 : i32, i32
  }
  func.func @transform_8(%arg0: i32) -> (i32, i32) {
    %c0_i32 = arith.constant 0 : i32
    %c0_i32_0 = arith.constant 0 : i32
    %c0_i32_1 = arith.constant 0 : i32
    return %c0_i32, %c0_i32_0 : i32, i32
  }
  func.func @transform_9(%arg0: i32) -> (i32, i32) {
    %c0_i32 = arith.constant 0 : i32
    %c0_i32_0 = arith.constant 0 : i32
    return %arg0, %c0_i32 : i32, i32
  }
}

</mosaic_0001>

<llo_original>
// kernel: ppo_actor_forward.1
$region0: #{ppo_actor_forward.1}
  #allocation0 [shape = 'u32[]', space=smem, size = 0x4, offset = 0x4, fixed_abs, tag = 'smem constant byte address 0x4 - core index']
  #allocation1 [shape = 'u32[144,128]{1,0:T(1,128)}', space=vmem, size = 0x12000, scoped, tag = 'internal scratch']
  %s0 = inlined_call_operand.vmem [shape: f32[8,3], index: 0, kind: input, shape index: {}]
  %s1 = inlined_call_operand.vmem [shape: f32[3,256], index: 1, kind: input, shape index: {}]
  %s2 = inlined_call_operand.vmem [shape: f32[1,256], index: 2, kind: input, shape index: {}, may-alias: {2,4}]
  %s3 = inlined_call_operand.vmem [shape: bf16[256,256], index: 3, kind: input, shape index: {}]
  %s4 = inlined_call_operand.vmem [shape: f32[1,256], index: 4, kind: input, shape index: {}, may-alias: {2,4}]
  %s5 = inlined_call_operand.vmem [shape: bf16[256,8], index: 5, kind: input, shape index: {}]
  %s6 = inlined_call_operand.vmem [shape: f32[1,8], index: 6, kind: input, shape index: {}]
  %s7 = inlined_call_operand.vmem [shape: f32[1,8], index: 7, kind: input, shape index: {}, may-alias: {7,8}]
  %s8 = inlined_call_operand.vmem [shape: f32[1,8], index: 8, kind: input, shape index: {}, may-alias: {7,8}]
  %s9 = inlined_call_operand.vmem [shape: f32[8,8], index: 9, kind: output, shape index: {}]
  %s10 = sld [smem:[#allocation0]]
  $region46: #{ppo_actor_forward.1} parent=0
    _
  %s12 = ssub.s32 1, %s10
  %s13 = scalar_select 0, %s12, %s10
  // Predicated region
  $region2: #{ppo_actor_forward.1} parent=0 // pred_check
    _
  $region3: #{ppo_actor_forward.1} parent=0 // pred_check_branch
    %15 = sbr.rel (0) target = $region5
  $region4: #{ppo_actor_forward.1} parent=0 // pred_region
    _
  $region5: #{ppo_actor_forward.1} parent=0 // pred_fallthru
    _
  // Predicated region
  $region6: #{ppo_actor_forward.1} parent=0 // pred_check
    _
  $region7: #{ppo_actor_forward.1} parent=0 // pred_check_branch
    %17 = sbr.rel (0) target = $region9
  $region8: #{ppo_actor_forward.1} parent=0 // pred_region
    _
  $region9: #{ppo_actor_forward.1} parent=0 // pred_fallthru
    _
  // Predicated region
  $region10: #{ppo_actor_forward.1} parent=0 // pred_check
    _
  $region11: #{ppo_actor_forward.1} parent=0 // pred_check_branch
    %19 = sbr.rel (0) target = $region13
  $region12: #{ppo_actor_forward.1} parent=0 // pred_region
    _
  $region13: #{ppo_actor_forward.1} parent=0 // pred_fallthru
    _
  // Predicated region
  $region14: #{ppo_actor_forward.1} parent=0 // pred_check
    _
  $region15: #{ppo_actor_forward.1} parent=0 // pred_check_branch
    %21 = sbr.rel (0) target = $region17
  $region16: #{ppo_actor_forward.1} parent=0 // pred_region
    _
  $region17: #{ppo_actor_forward.1} parent=0 // pred_fallthru
    _
  // Predicated region
  $region18: #{ppo_actor_forward.1} parent=0 // pred_check
    _
  $region19: #{ppo_actor_forward.1} parent=0 // pred_check_branch
    %23 = sbr.rel (0) target = $region21
  $region20: #{ppo_actor_forward.1} parent=0 // pred_region
    _
  $region21: #{ppo_actor_forward.1} parent=0 // pred_fallthru
    _
  // Predicated region
  $region22: #{ppo_actor_forward.1} parent=0 // pred_check
    _
  $region23: #{ppo_actor_forward.1} parent=0 // pred_check_branch
    %25 = sbr.rel (0) target = $region25
  $region24: #{ppo_actor_forward.1} parent=0 // pred_region
    _
  $region25: #{ppo_actor_forward.1} parent=0 // pred_fallthru
    _
  // Predicated region
  $region26: #{ppo_actor_forward.1} parent=0 // pred_check
    _
  $region27: #{ppo_actor_forward.1} parent=0 // pred_check_branch
    %27 = sbr.rel (0) target = $region29
  $region28: #{ppo_actor_forward.1} parent=0 // pred_region
    _
  $region29: #{ppo_actor_forward.1} parent=0 // pred_fallthru
    _
  // Predicated region
  $region30: #{ppo_actor_forward.1} parent=0 // pred_check
    _
  $region31: #{ppo_actor_forward.1} parent=0 // pred_check_branch
    %29 = sbr.rel (0) target = $region33
  $region32: #{ppo_actor_forward.1} parent=0 // pred_region
    _
  $region33: #{ppo_actor_forward.1} parent=0 // pred_fallthru
    _
  // Predicated region
  $region34: #{ppo_actor_forward.1} parent=0 // pred_check
    _
  $region35: #{ppo_actor_forward.1} parent=0 // pred_check_branch
    %31 = sbr.rel (0) target = $region37
  $region36: #{ppo_actor_forward.1} parent=0 // pred_region
    _
  $region37: #{ppo_actor_forward.1} parent=0 // pred_fallthru
    _
  %v33 = vld [vmem:[%s0] sm:$0xff]
  %v34 = vld [vmem:[%s1] sm:$0x77]
  %v35 = vld [vmem:[%s2] sm:$0x3]
  %v36 = vld [vmem:[%s3] sm:$0xff]
  %v37 = vld [vmem:[%s3 + $0x8] sm:$0xff]
  %v38 = vld [vmem:[%s3 + $0x10] sm:$0xff]
  %v39 = vld [vmem:[%s3 + $0x18] sm:$0xff]
  %v40 = vld [vmem:[%s3 + $0x20] sm:$0xff]
  %v41 = vld [vmem:[%s3 + $0x28] sm:$0xff]
  %v42 = vld [vmem:[%s3 + $0x30] sm:$0xff]
  %v43 = vld [vmem:[%s3 + $0x38] sm:$0xff]
  %v44 = vld [vmem:[%s3 + $0x40] sm:$0xff]
  %v45 = vld [vmem:[%s3 + $0x48] sm:$0xff]
  %v46 = vld [vmem:[%s3 + $0x50] sm:$0xff]
  %v47 = vld [vmem:[%s3 + $0x58] sm:$0xff]
  %v48 = vld [vmem:[%s3 + $0x60] sm:$0xff]
  %v49 = vld [vmem:[%s3 + $0x68] sm:$0xff]
  %v50 = vld [vmem:[%s3 + $0x70] sm:$0xff]
  %v51 = vld [vmem:[%s3 + $0x78] sm:$0xff]
  %v52 = vld [vmem:[%s3 + $0x80] sm:$0xff]
  %v53 = vld [vmem:[%s3 + $0x88] sm:$0xff]
  %v54 = vld [vmem:[%s3 + $0x90] sm:$0xff]
  %v55 = vld [vmem:[%s3 + $0x98] sm:$0xff]
  %v56 = vld [vmem:[%s3 + $0xa0] sm:$0xff]
  %v57 = vld [vmem:[%s3 + $0xa8] sm:$0xff]
  %v58 = vld [vmem:[%s3 + $0xb0] sm:$0xff]
  %v59 = vld [vmem:[%s3 + $0xb8] sm:$0xff]
  %v60 = vld [vmem:[%s3 + $0xc0] sm:$0xff]
  %v61 = vld [vmem:[%s3 + $0xc8] sm:$0xff]
  %v62 = vld [vmem:[%s3 + $0xd0] sm:$0xff]
  %v63 = vld [vmem:[%s3 + $0xd8] sm:$0xff]
  %v64 = vld [vmem:[%s3 + $0xe0] sm:$0xff]
  %v65 = vld [vmem:[%s3 + $0xe8] sm:$0xff]
  %v66 = vld [vmem:[%s3 + $0xf0] sm:$0xff]
  %v67 = vld [vmem:[%s3 + $0xf8] sm:$0xff]
  %v68 = vld [vmem:[%s4] sm:$0x3]
  %v69 = vld [vmem:[%s5] sm:$0xf]
  %v70 = vld [vmem:[%s5 + $0x4] sm:$0xf]
  %v71 = vld [vmem:[%s5 + $0x8] sm:$0xf]
  %v72 = vld [vmem:[%s5 + $0xc] sm:$0xf]
  %v73 = vld [vmem:[%s5 + $0x10] sm:$0xf]
  %v74 = vld [vmem:[%s5 + $0x14] sm:$0xf]
  %v75 = vld [vmem:[%s5 + $0x18] sm:$0xf]
  %v76 = vld [vmem:[%s5 + $0x1c] sm:$0xf]
  %v77 = vld [vmem:[%s5 + $0x20] sm:$0xf]
  %v78 = vld [vmem:[%s5 + $0x24] sm:$0xf]
  %v79 = vld [vmem:[%s5 + $0x28] sm:$0xf]
  %v80 = vld [vmem:[%s5 + $0x2c] sm:$0xf]
  %v81 = vld [vmem:[%s5 + $0x30] sm:$0xf]
  %v82 = vld [vmem:[%s5 + $0x34] sm:$0xf]
  %v83 = vld [vmem:[%s5 + $0x38] sm:$0xf]
  %v84 = vld [vmem:[%s5 + $0x3c] sm:$0xf]
  %v85 = vld [vmem:[%s5 + $0x40] sm:$0xf]
  %v86 = vld [vmem:[%s5 + $0x44] sm:$0xf]
  %v87 = vld [vmem:[%s5 + $0x48] sm:$0xf]
  %v88 = vld [vmem:[%s5 + $0x4c] sm:$0xf]
  %v89 = vld [vmem:[%s5 + $0x50] sm:$0xf]
  %v90 = vld [vmem:[%s5 + $0x54] sm:$0xf]
  %v91 = vld [vmem:[%s5 + $0x58] sm:$0xf]
  %v92 = vld [vmem:[%s5 + $0x5c] sm:$0xf]
  %v93 = vld [vmem:[%s5 + $0x60] sm:$0xf]
  %v94 = vld [vmem:[%s5 + $0x64] sm:$0xf]
  %v95 = vld [vmem:[%s5 + $0x68] sm:$0xf]
  %v96 = vld [vmem:[%s5 + $0x6c] sm:$0xf]
  %v97 = vld [vmem:[%s5 + $0x70] sm:$0xf]
  %v98 = vld [vmem:[%s5 + $0x74] sm:$0xf]
  %v99 = vld [vmem:[%s5 + $0x78] sm:$0xf]
  %v100 = vld [vmem:[%s5 + $0x7c] sm:$0xf]
  %v101 = vld [vmem:[%s6] sm:$0x1]
  %v102 = vld [vmem:[%s7] sm:$0x1]
  %v103 = vld [vmem:[%s8] sm:$0x1]
  %105 = vset.pattern.permute.xlu0 0
  %106 = vperm.xlu0 %105, %v33
  %v107 = vpop.permute.xlu0 %106
  %v110 = vlaneseq
  %v111 = vshrl.u32 %v110, 7
  %v112 = vsub.s32 0, %v111
  %v113 = vrot.slane %v34, %v112
  %v114 = vlaneseq
  %v115 = vshrl.u32 %v114, 7
  %v116 = vsub.s32 4, %v115
  %v117 = vrot.slane %v34, %v116
  %v120 = vlaneseq
  %v121 = vshrl.u32 %v120, 7
  %v122 = vsub.s32 0, %v121
  %v123 = vrot.slane %v113, %v122
  %v124 = vlaneseq
  %v125 = vshrl.u32 %v124, 7
  %v126 = vsub.s32 0, %v125
  %v127 = vrot.slane %v117, %v126
  %v128 = vmul.f32 %v107, %v123
  %v129 = vmul.f32 %v107, %v127
  %v131 = vlaneseq
  %v132 = vshrl.u32 %v131, 7
  %v133 = vsub.s32 0, %v132
  %v134 = vrot.slane %v35, %v133
  %v135 = vlaneseq
  %v136 = vshrl.u32 %v135, 7
  %v137 = vsub.s32 1, %v136
  %v138 = vrot.slane %v35, %v137
  %v141 = vadd.f32 %v134, %v128
  %v142 = vadd.f32 %v138, %v129
  %143 = vset.pattern.permute.xlu0 1
  %144 = vperm.xlu0 %143, %v33
  %v145 = vpop.permute.xlu0 %144
  %v147 = vlaneseq
  %v148 = vshrl.u32 %v147, 7
  %v149 = vsub.s32 1, %v148
  %v150 = vrot.slane %v34, %v149
  %v151 = vlaneseq
  %v152 = vshrl.u32 %v151, 7
  %v153 = vsub.s32 5, %v152
  %v154 = vrot.slane %v34, %v153
  %v157 = vlaneseq
  %v158 = vshrl.u32 %v157, 7
  %v159 = vsub.s32 1, %v158
  %v160 = vrot.slane %v150, %v159
  %v161 = vlaneseq
  %v162 = vshrl.u32 %v161, 7
  %v163 = vsub.s32 1, %v162
  %v164 = vrot.slane %v154, %v163
  %v165 = vmul.f32 %v145, %v160
  %v166 = vmul.f32 %v145, %v164
  %v167 = vadd.f32 %v141, %v165
  %v168 = vadd.f32 %v142, %v166
  %169 = vset.pattern.permute.xlu0 2
  %170 = vperm.xlu0 %169, %v33
  %v171 = vpop.permute.xlu0 %170
  %v173 = vlaneseq
  %v174 = vshrl.u32 %v173, 7
  %v175 = vsub.s32 2, %v174
  %v176 = vrot.slane %v34, %v175
  %v177 = vlaneseq
  %v178 = vshrl.u32 %v177, 7
  %v179 = vsub.s32 6, %v178
  %v180 = vrot.slane %v34, %v179
  %v183 = vlaneseq
  %v184 = vshrl.u32 %v183, 7
  %v185 = vsub.s32 2, %v184
  %v186 = vrot.slane %v176, %v185
  %v187 = vlaneseq
  %v188 = vshrl.u32 %v187, 7
  %v189 = vsub.s32 2, %v188
  %v190 = vrot.slane %v180, %v189
  %v191 = vmul.f32 %v171, %v186
  %v192 = vmul.f32 %v171, %v190
  %v193 = vadd.f32 %v167, %v191
  %v194 = vadd.f32 %v168, %v192
  %v195 = vtanh.pop %v193
  %v196 = vtanh.pop %v194
  %v197 = vpack.c.bf16 %v195, %v195
  %v198 = vpack.c.bf16 %v196, %v196
  %v200 = vlaneseq
  %v201 = vshrl.u32 %v200, 7
  %v202 = vsub.s32 0, %v201
  %v203 = vrot.slane %v68, %v202
  %v204 = vlaneseq
  %v205 = vshrl.u32 %v204, 7
  %v206 = vsub.s32 1, %v205
  %v207 = vrot.slane %v68, %v206
  %v242 = vunpack.c.l.b16 %v36
  %v243 = vunpack.c.h.b16 %v36
  %v244 = vunpack.c.l.b16 %v37
  %v245 = vunpack.c.h.b16 %v37
  %v246 = vunpack.c.l.b16 %v38
  %v247 = vunpack.c.h.b16 %v38
  %v248 = vunpack.c.l.b16 %v39
  %v249 = vunpack.c.h.b16 %v39
  %v250 = vunpack.c.l.b16 %v40
  %v251 = vunpack.c.h.b16 %v40
  %v252 = vunpack.c.l.b16 %v41
  %v253 = vunpack.c.h.b16 %v41
  %v254 = vunpack.c.l.b16 %v42
  %v255 = vunpack.c.h.b16 %v42
  %v256 = vunpack.c.l.b16 %v43
  %v257 = vunpack.c.h.b16 %v43
  %v258 = vunpack.c.l.b16 %v44
  %v259 = vunpack.c.h.b16 %v44
  %v260 = vunpack.c.l.b16 %v45
  %v261 = vunpack.c.h.b16 %v45
  %v262 = vunpack.c.l.b16 %v46
  %v263 = vunpack.c.h.b16 %v46
  %v264 = vunpack.c.l.b16 %v47
  %v265 = vunpack.c.h.b16 %v47
  %v266 = vunpack.c.l.b16 %v48
  %v267 = vunpack.c.h.b16 %v48
  %v268 = vunpack.c.l.b16 %v49
  %v269 = vunpack.c.h.b16 %v49
  %v270 = vunpack.c.l.b16 %v50
  %v271 = vunpack.c.h.b16 %v50
  %v272 = vunpack.c.l.b16 %v51
  %v273 = vunpack.c.h.b16 %v51
  %v274 = vunpack.c.l.b16 %v52
  %v275 = vunpack.c.h.b16 %v52
  %v276 = vunpack.c.l.b16 %v53
  %v277 = vunpack.c.h.b16 %v53
  %v278 = vunpack.c.l.b16 %v54
  %v279 = vunpack.c.h.b16 %v54
  %v280 = vunpack.c.l.b16 %v55
  %v281 = vunpack.c.h.b16 %v55
  %v282 = vunpack.c.l.b16 %v56
  %v283 = vunpack.c.h.b16 %v56
  %v284 = vunpack.c.l.b16 %v57
  %v285 = vunpack.c.h.b16 %v57
  %v286 = vunpack.c.l.b16 %v58
  %v287 = vunpack.c.h.b16 %v58
  %v288 = vunpack.c.l.b16 %v59
  %v289 = vunpack.c.h.b16 %v59
  %v290 = vunpack.c.l.b16 %v60
  %v291 = vunpack.c.h.b16 %v60
  %v292 = vunpack.c.l.b16 %v61
  %v293 = vunpack.c.h.b16 %v61
  %v294 = vunpack.c.l.b16 %v62
  %v295 = vunpack.c.h.b16 %v62
  %v296 = vunpack.c.l.b16 %v63
  %v297 = vunpack.c.h.b16 %v63
  %v298 = vunpack.c.l.b16 %v64
  %v299 = vunpack.c.h.b16 %v64
  %v300 = vunpack.c.l.b16 %v65
  %v301 = vunpack.c.h.b16 %v65
  %v302 = vunpack.c.l.b16 %v66
  %v303 = vunpack.c.h.b16 %v66
  %v304 = vunpack.c.l.b16 %v67
  %v305 = vunpack.c.h.b16 %v67
  %v306 = vpack.c.b16 %v244, %v242
  %v307 = vpack.c.b16 %v245, %v243
  %v308 = vpack.c.b16 %v248, %v246
  %v309 = vpack.c.b16 %v249, %v247
  %v310 = vpack.c.b16 %v252, %v250
  %v311 = vpack.c.b16 %v253, %v251
  %v312 = vpack.c.b16 %v256, %v254
  %v313 = vpack.c.b16 %v257, %v255
  %v314 = vpack.c.b16 %v260, %v258
  %v315 = vpack.c.b16 %v261, %v259
  %v316 = vpack.c.b16 %v264, %v262
  %v317 = vpack.c.b16 %v265, %v263
  %v318 = vpack.c.b16 %v268, %v266
  %v319 = vpack.c.b16 %v269, %v267
  %v320 = vpack.c.b16 %v272, %v270
  %v321 = vpack.c.b16 %v273, %v271
  %v322 = vpack.c.b16 %v276, %v274
  %v323 = vpack.c.b16 %v277, %v275
  %v324 = vpack.c.b16 %v280, %v278
  %v325 = vpack.c.b16 %v281, %v279
  %v326 = vpack.c.b16 %v284, %v282
  %v327 = vpack.c.b16 %v285, %v283
  %v328 = vpack.c.b16 %v288, %v286
  %v329 = vpack.c.b16 %v289, %v287
  %v330 = vpack.c.b16 %v292, %v290
  %v331 = vpack.c.b16 %v293, %v291
  %v332 = vpack.c.b16 %v296, %v294
  %v333 = vpack.c.b16 %v297, %v295
  %v334 = vpack.c.b16 %v300, %v298
  %v335 = vpack.c.b16 %v301, %v299
  %v336 = vpack.c.b16 %v304, %v302
  %v337 = vpack.c.b16 %v305, %v303
  %370 = vmatprep.subr.bf16.mxu0 %v307
  %371 = vmatpush1.bf16.msra.mxu0 %v306
  %372 = vmatprep.subr.bf16.mxu0 %v309
  %373 = vmatpush1.bf16.msra.mxu0 %v308
  %374 = vmatprep.subr.bf16.mxu0 %v311
  %375 = vmatpush1.bf16.msra.mxu0 %v310
  %376 = vmatprep.subr.bf16.mxu0 %v313
  %377 = vmatpush1.bf16.msra.mxu0 %v312
  %378 = vmatprep.subr.bf16.mxu0 %v315
  %379 = vmatpush1.bf16.msra.mxu0 %v314
  %380 = vmatprep.subr.bf16.mxu0 %v317
  %381 = vmatpush1.bf16.msra.mxu0 %v316
  %382 = vmatprep.subr.bf16.mxu0 %v319
  %383 = vmatpush1.bf16.msra.mxu0 %v318
  %384 = vmatprep.subr.bf16.mxu0 %v321
  %385 = vmatpush1.bf16.msra.mxu0 %v320
  %386 = vmatprep.subr.bf16.mxu0 %v323
  %387 = vmatpush1.bf16.msra.mxu0 %v322
  %388 = vmatprep.subr.bf16.mxu0 %v325
  %389 = vmatpush1.bf16.msra.mxu0 %v324
  %390 = vmatprep.subr.bf16.mxu0 %v327
  %391 = vmatpush1.bf16.msra.mxu0 %v326
  %392 = vmatprep.subr.bf16.mxu0 %v329
  %393 = vmatpush1.bf16.msra.mxu0 %v328
  %394 = vmatprep.subr.bf16.mxu0 %v331
  %395 = vmatpush1.bf16.msra.mxu0 %v330
  %396 = vmatprep.subr.bf16.mxu0 %v333
  %397 = vmatpush1.bf16.msra.mxu0 %v332
  %398 = vmatprep.subr.bf16.mxu0 %v335
  %399 = vmatpush1.bf16.msra.mxu0 %v334
  %400 = vmatprep.subr.bf16.mxu0 %v337
  %401 = vmatpush1.bf16.msra.mxu0 %v336
  %402 = vmatprep.mubr.bf16.mxu0 %v198
  %403 = vmatmul.mubr.bf16.gmra.mrb[0].mxu0 %v197
  %v404 = vpop.f32.mrb[0].mxu0
  %v405 = vadd.f32 %v203, %v404
  %v406 = vpop.f32.mrb[0].mxu0
  %v407 = vadd.f32 %v207, %v406
  %v408 = vpop.f32.mrb[0].mxu0
  %v409 = vpop.f32.mrb[0].mxu0
  %410 = vdwg.mxu0
  %v411 = vtanh.pop %v405
  %v412 = vtanh.pop %v407
  %v413 = vpack.c.bf16 %v411, %v411
  %v414 = vpack.c.bf16 %v412, %v412
  %v416 = vlaneseq
  %v417 = vshrl.u32 %v416, 7
  %v418 = vsub.s32 0, %v417
  %v419 = vrot.slane %v101, %v418
  %v453 = vunpack.c.l.b16 %v69
  %v454 = vunpack.c.l.b16 %v70
  %v455 = vunpack.c.l.b16 %v71
  %v456 = vunpack.c.l.b16 %v72
  %v457 = vunpack.c.l.b16 %v73
  %v458 = vunpack.c.l.b16 %v74
  %v459 = vunpack.c.l.b16 %v75
  %v460 = vunpack.c.l.b16 %v76
  %v461 = vunpack.c.l.b16 %v77
  %v462 = vunpack.c.l.b16 %v78
  %v463 = vunpack.c.l.b16 %v79
  %v464 = vunpack.c.l.b16 %v80
  %v465 = vunpack.c.l.b16 %v81
  %v466 = vunpack.c.l.b16 %v82
  %v467 = vunpack.c.l.b16 %v83
  %v468 = vunpack.c.l.b16 %v84
  %v469 = vunpack.c.l.b16 %v85
  %v470 = vunpack.c.l.b16 %v86
  %v471 = vunpack.c.l.b16 %v87
  %v472 = vunpack.c.l.b16 %v88
  %v473 = vunpack.c.l.b16 %v89
  %v474 = vunpack.c.l.b16 %v90
  %v475 = vunpack.c.l.b16 %v91
  %v476 = vunpack.c.l.b16 %v92
  %v477 = vunpack.c.l.b16 %v93
  %v478 = vunpack.c.l.b16 %v94
  %v479 = vunpack.c.l.b16 %v95
  %v480 = vunpack.c.l.b16 %v96
  %v481 = vunpack.c.l.b16 %v97
  %v482 = vunpack.c.l.b16 %v98
  %v483 = vunpack.c.l.b16 %v99
  %v484 = vunpack.c.l.b16 %v100
  %v485 = vpack.c.b16 %v454, %v453
  %v486 = vpack.c.b16 %v456, %v455
  %v487 = vpack.c.b16 %v458, %v457
  %v488 = vpack.c.b16 %v460, %v459
  %v489 = vpack.c.b16 %v462, %v461
  %v490 = vpack.c.b16 %v464, %v463
  %v491 = vpack.c.b16 %v466, %v465
  %v492 = vpack.c.b16 %v468, %v467
  %v493 = vpack.c.b16 %v470, %v469
  %v494 = vpack.c.b16 %v472, %v471
  %v495 = vpack.c.b16 %v474, %v473
  %v496 = vpack.c.b16 %v476, %v475
  %v497 = vpack.c.b16 %v478, %v477
  %v498 = vpack.c.b16 %v480, %v479
  %v499 = vpack.c.b16 %v482, %v481
  %v500 = vpack.c.b16 %v484, %v483
  %517 = vmatprep.subr.bf16.mxu0 0
  %518 = vmatpush1.bf16.msra.mxu0 %v485
  %519 = vmatprep.subr.bf16.mxu0 0
  %520 = vmatpush1.bf16.msra.mxu0 %v486
  %521 = vmatprep.subr.bf16.mxu0 0
  %522 = vmatpush1.bf16.msra.mxu0 %v487
  %523 = vmatprep.subr.bf16.mxu0 0
  %524 = vmatpush1.bf16.msra.mxu0 %v488
  %525 = vmatprep.subr.bf16.mxu0 0
  %526 = vmatpush1.bf16.msra.mxu0 %v489
  %527 = vmatprep.subr.bf16.mxu0 0
  %528 = vmatpush1.bf16.msra.mxu0 %v490
  %529 = vmatprep.subr.bf16.mxu0 0
  %530 = vmatpush1.bf16.msra.mxu0 %v491
  %531 = vmatprep.subr.bf16.mxu0 0
  %532 = vmatpush1.bf16.msra.mxu0 %v492
  %533 = vmatprep.subr.bf16.mxu0 0
  %534 = vmatpush1.bf16.msra.mxu0 %v493
  %535 = vmatprep.subr.bf16.mxu0 0
  %536 = vmatpush1.bf16.msra.mxu0 %v494
  %537 = vmatprep.subr.bf16.mxu0 0
  %538 = vmatpush1.bf16.msra.mxu0 %v495
  %539 = vmatprep.subr.bf16.mxu0 0
  %540 = vmatpush1.bf16.msra.mxu0 %v496
  %541 = vmatprep.subr.bf16.mxu0 0
  %542 = vmatpush1.bf16.msra.mxu0 %v497
  %543 = vmatprep.subr.bf16.mxu0 0
  %544 = vmatpush1.bf16.msra.mxu0 %v498
  %545 = vmatprep.subr.bf16.mxu0 0
  %546 = vmatpush1.bf16.msra.mxu0 %v499
  %547 = vmatprep.subr.bf16.mxu0 0
  %548 = vmatpush1.bf16.msra.mxu0 %v500
  %549 = vmatprep.mubr.bf16.mxu0 %v414
  %550 = vmatmul.mubr.bf16.gmra.mrb[0].mxu0 %v413
  %v551 = vpop.f32.mrb[0].mxu0
  %v552 = vadd.f32 %v419, %v551
  %v553 = vpop.f32.mrb[0].mxu0
  %v554 = vpop.f32.mrb[0].mxu0
  %v555 = vpop.f32.mrb[0].mxu0
  %556 = vdwg.mxu0
  %v557 = vtanh.pop %v552
  %v559 = vlaneseq
  %v560 = vshrl.u32 %v559, 7
  %v561 = vsub.s32 0, %v560
  %v562 = vrot.slane %v102, %v561
  %v564 = vmul.f32 %v557, %v562
  %v566 = vlaneseq
  %v567 = vshrl.u32 %v566, 7
  %v568 = vsub.s32 0, %v567
  %v569 = vrot.slane %v103, %v568
  %v571 = vadd.f32 %v564, %v569
  %vm572 = vcmask 64512
  %573 = vst.msk [vmem:[%s9] sm:$0xff] %vm572, %v571
  // Predicated region
  $region38: #{ppo_actor_forward.1} parent=0 // pred_check
    _
  $region39: #{ppo_actor_forward.1} parent=0 // pred_check_branch
    %575 = sbr.rel (0) target = $region41
  $region40: #{ppo_actor_forward.1} parent=0 // pred_region
    _
  $region41: #{ppo_actor_forward.1} parent=0 // pred_fallthru
    _
  // Predicated region
  $region42: #{ppo_actor_forward.1} parent=0 // pred_check
    _
  $region43: #{ppo_actor_forward.1} parent=0 // pred_check_branch
    %577 = sbr.rel (0) target = $region45
  $region44: #{ppo_actor_forward.1} parent=0 // pred_region
    _
  $region45: #{ppo_actor_forward.1} parent=0 // pred_fallthru
    _

</llo_original>
